<compile_context>
chip_gen: v5e
topology: v5e:2x2
jax: 0.10.0
libtpu: 0.0.40
codegen_flags: <defaults>
</compile_context>

<pallas_src>
import functools

import jax
import jax.numpy as jnp
from jax.experimental import pallas as pl
from jax.experimental.pallas import tpu as pltpu


def a9_kernel(c_ref, q_ref, r_ref, o_ref):
    # c_ref: (b, tLc, 1), q_ref: (b, 1, tLq), r_ref/o_ref: (b, tLc, tLq)
    # Upcast to f32 for the multiply (v5e has no bf16 VALU), then cast out.
    c = c_ref[...].astype(jnp.float32)
    q = q_ref[...].astype(jnp.float32)
    r = r_ref[...].astype(jnp.float32)
    o_ref[...] = (c * q * r).astype(o_ref.dtype)


# Footprint (elements) below which one kernel invocation handles everything.
_SINGLE_STEP_ELEMS = 512 * 1024  # ~2 MiB in f32, trivially fits VMEM everywhere.


def a9_forward(c_sel, q_sel, rel, *, out_dtype=None, alias_rel=False,
               tile_lc=512, tile_lq=2048):
    """c_sel: (B, Lc, 1), q_sel: (B, 1, Lq), rel: (B, Lc, Lq) -> (B, Lc, Lq)."""
    B, Lc, _ = c_sel.shape
    Lq = q_sel.shape[-1]
    assert rel.shape == (B, Lc, Lq)
    out_dtype = rel.dtype if out_dtype is None else out_dtype

    itemsize = jnp.dtype(out_dtype).itemsize
    bytes_accessed = (c_sel.size * c_sel.dtype.itemsize
                      + q_sel.size * q_sel.dtype.itemsize
                      + rel.size * rel.dtype.itemsize
                      + B * Lc * Lq * itemsize)
    cost = pl.CostEstimate(flops=2 * B * Lc * Lq, transcendentals=0,
                           bytes_accessed=bytes_accessed)

    if B * Lc * Lq <= _SINGLE_STEP_ELEMS:
        # Tiny problem: one grid step, full-array blocks (no pipeline overhead).
        grid = (1,)
        in_specs = [
            pl.BlockSpec((B, Lc, 1), lambda i: (0, 0, 0)),
            pl.BlockSpec((B, 1, Lq), lambda i: (0, 0, 0)),
            pl.BlockSpec((B, Lc, Lq), lambda i: (0, 0, 0)),
        ]
        out_spec = pl.BlockSpec((B, Lc, Lq), lambda i: (0, 0, 0))
        dims = ("arbitrary",)
    else:
        # Lane-dense tiles: last dim a large multiple of 128, second-to-last a
        # multiple of 8 (or the full extent). Keeps VMEM (double-buffered rel +
        # out tiles) far under the 32 MiB scoped default even on v7x.
        t_lc = Lc if Lc <= tile_lc else tile_lc
        t_lq = Lq if Lq <= tile_lq else tile_lq
        grid = (B, pl.cdiv(Lc, t_lc), pl.cdiv(Lq, t_lq))
        in_specs = [
            pl.BlockSpec((1, t_lc, 1), lambda b, i, j: (b, i, 0)),
            pl.BlockSpec((1, 1, t_lq), lambda b, i, j: (b, 0, j)),
            pl.BlockSpec((1, t_lc, t_lq), lambda b, i, j: (b, i, j)),
        ]
        out_spec = pl.BlockSpec((1, t_lc, t_lq), lambda b, i, j: (b, i, j))
        # All axes independent -> parallel (lets v7x shard tiles over its 2 TCs).
        dims = ("parallel", "parallel", "parallel")

    io_aliases = {}
    if alias_rel and jnp.dtype(rel.dtype) == jnp.dtype(out_dtype):
        io_aliases = {2: 0}  # reuse rel's HBM buffer for the output

    return pl.pallas_call(
        a9_kernel,
        out_shape=jax.ShapeDtypeStruct((B, Lc, Lq), out_dtype),
        grid=grid,
        in_specs=in_specs,
        out_specs=out_spec,
        input_output_aliases=io_aliases,
        cost_estimate=cost,
        compiler_params=pltpu.CompilerParams(dimension_semantics=dims),
    )(c_sel, q_sel, rel)


if __name__ == "__main__":
    key = jax.random.PRNGKey(0)

    # --- Small case (shapes implied by the module: batch_l=2, context_l=16,
    #     max_query_l=128) -> single-invocation path. ---
    B, Lc, Lq = 2, 16, 128
    k1, k2, k3 = jax.random.split(key, 3)
    # Selectors are {0,1} masks; carry them as bf16 to halve HBM traffic
    # (values are exactly representable, so results are bit-exact).
    c_sel = (jax.random.uniform(k1, (B, Lc, 1)) > 0.5).astype(jnp.bfloat16)
    q_sel = (jax.random.uniform(k2, (B, 1, Lq)) > 0.5).astype(jnp.bfloat16)
    rel = (jax.random.uniform(k3, (B, Lc, Lq)) > 0.5).astype(jnp.bfloat16)

    out = a9_forward(c_sel, q_sel, rel)
    jax.block_until_ready(out)

    ref = (c_sel.astype(jnp.float32) * q_sel.astype(jnp.float32)
           * rel.astype(jnp.float32))
    assert out.shape == (B, Lc, Lq)
    assert jnp.allclose(out.astype(jnp.float32), ref), "small-case mismatch"

    # --- Larger case to exercise the lane-dense tiled / parallel-grid path. ---
    B2, Lc2, Lq2 = 2, 1024, 2048
    k4, k5, k6 = jax.random.split(jax.random.PRNGKey(1), 3)
    c2 = (jax.random.uniform(k4, (B2, Lc2, 1)) > 0.5).astype(jnp.bfloat16)
    q2 = (jax.random.uniform(k5, (B2, 1, Lq2)) > 0.5).astype(jnp.bfloat16)
    r2 = (jax.random.uniform(k6, (B2, Lc2, Lq2)) > 0.5).astype(jnp.bfloat16)

    out2 = a9_forward(c2, q2, r2, tile_lc=512, tile_lq=1024)
    jax.block_until_ready(out2)
    ref2 = (c2.astype(jnp.float32) * q2.astype(jnp.float32)
            * r2.astype(jnp.float32))
    assert jnp.allclose(out2.astype(jnp.float32), ref2), "tiled-case mismatch"

    print("KERNEL_OK")
</pallas_src>

<mosaic_0001>
module attributes {stable_mosaic.version = 11 : i64} {
  func.func @a9_kernel(%arg0: i32, %arg1: memref<2x16x1xbf16, #tpu.memory_space<vmem>>, %arg2: memref<2x1x128xbf16, #tpu.memory_space<vmem>>, %arg3: memref<2x16x128xbf16, #tpu.memory_space<vmem>>, %arg4: memref<2x16x128xbf16, #tpu.memory_space<vmem>>) attributes {dimension_semantics = [#tpu.dimension_semantics<arbitrary>], iteration_bounds = array<i64: 1>, scalar_prefetch = 0 : i64, scratch_operands = 0 : i64, tpu.core_type = #tpu.core_type<tc>, window_params = [{pipeline_mode = #tpu.pipeline_mode<synchronous>, transform_indices = @transform_0, window_bounds = array<i64: 2, 16, 1>}, {pipeline_mode = #tpu.pipeline_mode<synchronous>, transform_indices = @transform_1, window_bounds = array<i64: 2, 1, 128>}, {pipeline_mode = #tpu.pipeline_mode<synchronous>, transform_indices = @transform_2, window_bounds = array<i64: 2, 16, 128>}, {pipeline_mode = #tpu.pipeline_mode<synchronous>, transform_indices = @transform_3, window_bounds = array<i64: 2, 16, 128>}]} {
    %c0 = arith.constant 0 : index
    %c0_0 = arith.constant 0 : index
    %c0_1 = arith.constant 0 : index
    %0 = vector.load %arg1[%c0, %c0_0, %c0_1] : memref<2x16x1xbf16, #tpu.memory_space<vmem>>, vector<2x16x1xbf16>
    %1 = arith.extf %0 : vector<2x16x1xbf16> to vector<2x16x1xf32>
    %c0_2 = arith.constant 0 : index
    %c0_3 = arith.constant 0 : index
    %c0_4 = arith.constant 0 : index
    %2 = vector.load %arg2[%c0_2, %c0_3, %c0_4] : memref<2x1x128xbf16, #tpu.memory_space<vmem>>, vector<2x1x128xbf16>
    %3 = arith.extf %2 : vector<2x1x128xbf16> to vector<2x1x128xf32>
    %c0_5 = arith.constant 0 : index
    %c0_6 = arith.constant 0 : index
    %c0_7 = arith.constant 0 : index
    %4 = vector.load %arg3[%c0_5, %c0_6, %c0_7] : memref<2x16x128xbf16, #tpu.memory_space<vmem>>, vector<2x16x128xbf16>
    %5 = arith.extf %4 : vector<2x16x128xbf16> to vector<2x16x128xf32>
    %6 = vector.broadcast %1 : vector<2x16x1xf32> to vector<2x16x128xf32>
    %7 = vector.broadcast %3 : vector<2x1x128xf32> to vector<2x16x128xf32>
    %8 = arith.mulf %6, %7 : vector<2x16x128xf32>
    %9 = arith.mulf %8, %5 : vector<2x16x128xf32>
    %10 = arith.truncf %9 : vector<2x16x128xf32> to vector<2x16x128xbf16>
    %c0_8 = arith.constant 0 : index
    %c0_9 = arith.constant 0 : index
    %c0_10 = arith.constant 0 : index
    %11 = vector.load %arg4[%c0_8, %c0_9, %c0_10] : memref<2x16x128xbf16, #tpu.memory_space<vmem>>, vector<2x16x128xbf16>
    tpu.vector_store %arg4[%c0_8, %c0_9, %c0_10], %10 {strides = array<i32>} : memref<2x16x128xbf16, #tpu.memory_space<vmem>>, vector<2x16x128xbf16>,
    return
  }
  func.func @transform_0(%arg0: i32) -> (i32, i32, i32) {
    %c0_i32 = arith.constant 0 : i32
    %c0_i32_0 = arith.constant 0 : i32
    %c0_i32_1 = arith.constant 0 : i32
    %c0_i32_2 = arith.constant 0 : i32
    return %c0_i32, %c0_i32_0, %c0_i32_1 : i32, i32, i32
  }
  func.func @transform_1(%arg0: i32) -> (i32, i32, i32) {
    %c0_i32 = arith.constant 0 : i32
    %c0_i32_0 = arith.constant 0 : i32
    %c0_i32_1 = arith.constant 0 : i32
    %c0_i32_2 = arith.constant 0 : i32
    return %c0_i32, %c0_i32_0, %c0_i32_1 : i32, i32, i32
  }
  func.func @transform_2(%arg0: i32) -> (i32, i32, i32) {
    %c0_i32 = arith.constant 0 : i32
    %c0_i32_0 = arith.constant 0 : i32
    %c0_i32_1 = arith.constant 0 : i32
    %c0_i32_2 = arith.constant 0 : i32
    return %c0_i32, %c0_i32_0, %c0_i32_1 : i32, i32, i32
  }
  func.func @transform_3(%arg0: i32) -> (i32, i32, i32) {
    %c0_i32 = arith.constant 0 : i32
    %c0_i32_0 = arith.constant 0 : i32
    %c0_i32_1 = arith.constant 0 : i32
    %c0_i32_2 = arith.constant 0 : i32
    return %c0_i32, %c0_i32_0, %c0_i32_1 : i32, i32, i32
  }
}

</mosaic_0001>

<llo_original>
// kernel: tpu_custom_call.1
$region0: #{tpu_custom_call.1}
  #allocation0 [shape = 'u32[]', space=smem, size = 0x4, offset = 0x4, fixed_abs, tag = 'smem constant byte address 0x4 - core index']
  #allocation1 [shape = 'u32[72,128]{1,0:T(1,128)}', space=vmem, size = 0x9000, scoped, tag = 'internal scratch']
  %s0 = inlined_call_operand.vmem [shape: bf16[2,16,1], index: 0, kind: input, shape index: {}]
  %s1 = inlined_call_operand.vmem [shape: bf16[2,1,128], index: 1, kind: input, shape index: {}]
  %s2 = inlined_call_operand.vmem [shape: bf16[2,16,128], index: 2, kind: input, shape index: {}]
  %s3 = inlined_call_operand.hbm [shape: bf16[2,16,128], index: 3, kind: output, shape index: {}]
  %s4 = sld [smem:[#allocation0]]
  $region22: #{tpu_custom_call.1} parent=0
    _
  %s6 = ssub.s32 1, %s4
  %s7 = scalar_select 0, %s6, %s4
  $region1: #{tpu_custom_call.1} parent=0
    #allocation2 [shape = 'u8[8192]{0}', space=vmem, size = 0x2000, scoped, tag = 'output window, operand 0, single buffered']
    #allocation3 [shape = 's32[1]{0}', space=sflag, size = 0x4, scoped, tag = 'scoped memory for tpu_custom_call.1']
    %8 = vsyncpa [#allocation3], 0
    // Predicated region
    $region2: #{tpu_custom_call.1} parent=1 // pred_check
      _
    $region3: #{tpu_custom_call.1} parent=1 // pred_check_branch
      %10 = sbr.rel (0) target = $region5
    $region4: #{tpu_custom_call.1} parent=1 // pred_region
      _
    $region5: #{tpu_custom_call.1} parent=1 // pred_fallthru
      _
    // Predicated region
    $region6: #{tpu_custom_call.1} parent=1 // pred_check
      _
    $region7: #{tpu_custom_call.1} parent=1 // pred_check_branch
      %12 = sbr.rel (0) target = $region9
    $region8: #{tpu_custom_call.1} parent=1 // pred_region
      _
    $region9: #{tpu_custom_call.1} parent=1 // pred_fallthru
      _
    // Predicated region
    $region10: #{tpu_custom_call.1} parent=1 // pred_check
      _
    $region11: #{tpu_custom_call.1} parent=1 // pred_check_branch
      %14 = sbr.rel (0) target = $region13
    $region12: #{tpu_custom_call.1} parent=1 // pred_region
      _
    $region13: #{tpu_custom_call.1} parent=1 // pred_fallthru
      _
    %v15 = vld [vmem:[%s0] sm:$0xf]
    %v16 = vld [vmem:[%s0 + $0x4] sm:$0xf]
    %v17 = vld [vmem:[%s0 + $0x8] sm:$0xf]
    %v18 = vld [vmem:[%s0 + $0xc] sm:$0xf]
    %v19 = vunpack.c.l.bf16 %v15
    %v20 = vunpack.c.l.bf16 %v16
    %v21 = vunpack.c.l.bf16 %v17
    %v22 = vunpack.c.l.bf16 %v18
    %v23 = vld [vmem:[%s1] sm:$0x1]
    %v24 = vld [vmem:[%s1 + $0x1] sm:$0x1]
    %v25 = vunpack.c.l.bf16 %v23
    %v26 = vunpack.c.l.bf16 %v24
    %v27 = vld [vmem:[%s2] sm:$0xf]
    %v28 = vld [vmem:[%s2 + $0x4] sm:$0xf]
    %v29 = vld [vmem:[%s2 + $0x8] sm:$0xf]
    %v30 = vld [vmem:[%s2 + $0xc] sm:$0xf]
    %v31 = vunpack.c.l.bf16 %v27
    %v32 = vunpack.c.l.bf16 %v28
    %v33 = vunpack.c.l.bf16 %v29
    %v34 = vunpack.c.l.bf16 %v30
    %36 = vset.pattern.permute.xlu0 0
    %37 = vperm.xlu0 %36, %v19
    %v38 = vpop.permute.xlu0 %37
    %41 = vset.pattern.permute.xlu0 0
    %42 = vperm.xlu0 %41, %v20
    %v43 = vpop.permute.xlu0 %42
    %46 = vset.pattern.permute.xlu0 0
    %47 = vperm.xlu0 %46, %v21
    %v48 = vpop.permute.xlu0 %47
    %51 = vset.pattern.permute.xlu0 0
    %52 = vperm.xlu0 %51, %v22
    %v53 = vpop.permute.xlu0 %52
    %v55 = vperm.slane %v25, 0
    %v56 = vperm.slane %v26, 0
    %v57 = vmul.f32 %v38, %v55
    %v58 = vmul.f32 %v43, %v55
    %v59 = vmul.f32 %v48, %v56
    %v60 = vmul.f32 %v53, %v56
    %v61 = vmul.f32 %v57, %v31
    %v62 = vmul.f32 %v58, %v32
    %v63 = vmul.f32 %v59, %v33
    %v64 = vmul.f32 %v60, %v34
    %v65 = vpack.c.bf16 %v61, %v61
    %v66 = vpack.c.bf16 %v62, %v62
    %v67 = vpack.c.bf16 %v63, %v63
    %v68 = vpack.c.bf16 %v64, %v64
    %69 = vst [vmem:[#allocation2] sm:$0xf] %v65
    %70 = vst [vmem:[#allocation2 + $0x4] sm:$0xf] %v66
    %71 = vst [vmem:[#allocation2 + $0x8] sm:$0xf] %v67
    %72 = vst [vmem:[#allocation2 + $0xc] sm:$0xf] %v68
    // Predicated region
    $region14: #{tpu_custom_call.1} parent=1 // pred_check
      _
    $region15: #{tpu_custom_call.1} parent=1 // pred_check_branch
      %74 = sbr.rel (0) target = $region17
    $region16: #{tpu_custom_call.1} parent=1 // pred_region
      %76 = vsyncadd [#allocation3], 0
      %s77 = sshll.u32 [#allocation2], 4
      %s78 = int_to_ptr.vmem [resolvable:$true] %s77
      %s79 = sshll.u32 %s3, 4
      %s80 = int_to_ptr.hbm [resolvable:$true] %s79
      %85 = dma.vmem_to_hbm [thread:$0]  %s78, 256, %s80, [#allocation3], 64, 64, 4
    $region17: #{tpu_custom_call.1} parent=1 // pred_fallthru
      _
    // Predicated region
    $region18: #{tpu_custom_call.1} parent=1 // pred_check
      _
    $region19: #{tpu_custom_call.1} parent=1 // pred_check_branch
      %87 = sbr.rel (0) target = $region21
    $region20: #{tpu_custom_call.1} parent=1 // pred_region
      %89 = dma.done [#allocation3], 256
    $region21: #{tpu_custom_call.1} parent=1 // pred_fallthru
      _
    %90 = vsyncpa [#allocation3], 1

</llo_original>
